<compile_context>
chip_gen: v7x
topology: tpu7x:2x2x1
jax: 0.10.0
libtpu: 0.0.40
codegen_flags: <defaults>
</compile_context>

<pallas_src>
import jax
import jax.numpy as jnp
from jax.experimental import pallas as pl
from jax.experimental.pallas import tpu as pltpu


def rbf_kernel(x_ref, ctm2_ref, c2_ref, nisg_ref, o_ref):
    # x_ref   : (TB, Fp)  input batch tile, F zero-padded to a lane multiple
    # ctm2_ref: (Fp, To)  -2 * centers^T, zero-padded on F and O
    # c2_ref  : (1,  To)  ||c||^2 per center (precomputed in wrapper)
    # nisg_ref: (1,  To)  -exp(-2*log_sigmas) = -1/sigma^2 (precomputed)
    # o_ref   : (TB, To)  output tile
    x = x_ref[...]

    x2 = jnp.sum(x * x, axis=-1, keepdims=True)                            # (TB, 1)
    xc_m2 = jnp.dot(x, ctm2_ref[...], preferred_element_type=jnp.float32)  # (TB, To) = -2 x.c

    # ||x - c||^2 via the matmul expansion, clamped >= 0 against cancellation.
    d2 = jnp.maximum(x2 + c2_ref[...] + xc_m2, 0.0)

    # gaussian basis with sigma folded in: exp(-(sqrt(d2)/sigma)^2) = exp(-d2/sigma^2)
    o_ref[...] = jnp.exp(d2 * nisg_ref[...]).astype(o_ref.dtype)


def _round_up(v, m):
    return ((v + m - 1) // m) * m


def _pick_batch_tile(B, cap):
    """Batch tile: multiple of 8, <= cap; prefer one that divides B exactly."""
    cap = max(8, (cap // 8) * 8)
    if B % 8 == 0:
        tb = min(cap, B)
        while tb >= 8:
            if B % tb == 0:
                return tb, B            # no batch padding needed
            tb -= 8
    tb = min(cap, _round_up(B, 8))
    return tb, _round_up(B, tb)


def _pick_o_tile(o_lane, cap):
    """Largest multiple of 128 <= cap that divides the lane-padded O."""
    cand = (min(cap, o_lane) // 128) * 128
    while cand >= 128:
        if o_lane % cand == 0:
            return cand
        cand -= 128
    return 128


def rbf_forward(x, centers, log_sigmas, *, tile_b=256, o_tile_cap=512,
                out_dtype=None, lane=128):
    B, F = x.shape
    O, Fc = centers.shape
    assert F == Fc, "feature dims of x and centers must match"

    f32 = jnp.float32
    out_dtype = x.dtype if out_dtype is None else out_dtype

    xp = x.astype(f32)
    c = centers.astype(f32)
    ls = log_sigmas.astype(f32)

    # ---- hoisted center-side precompute (done once, outside the grid) ----
    ct_m2 = -2.0 * c.T                       # (F, O)  -2*C^T, MXU-ready layout
    c2 = jnp.sum(c * c, axis=-1)             # (O,)    ||c||^2
    nisg = -jnp.exp(-2.0 * ls)               # (O,)    -1/sigma^2

    # ---- padding / tiling choices ----
    F_pad = _round_up(F, lane)               # lane-dense x loads, aligned MXU K
    O_lane = _round_up(O, lane)              # lane-dense output stores
    o_tile = _pick_o_tile(O_lane, o_tile_cap)
    O_pad = _round_up(O_lane, o_tile)
    tb, B_pad = _pick_batch_tile(B, tile_b)

    if F_pad != F or B_pad != B:
        xp = jnp.pad(xp, ((0, B_pad - B), (0, F_pad - F)))
    if F_pad != F or O_pad != O:
        ct_m2 = jnp.pad(ct_m2, ((0, F_pad - F), (0, O_pad - O)))
    if O_pad != O:
        c2 = jnp.pad(c2, (0, O_pad - O))
        nisg = jnp.pad(nisg, (0, O_pad - O))
    c2 = c2.reshape(1, O_pad)
    nisg = nisg.reshape(1, O_pad)

    nb, no = B_pad // tb, O_pad // o_tile
    grid = (nb, no)

    # Center-side inputs are constant-index (0, 0) across the whole grid only
    # when O fits in a single tile -> nothing to prefetch, single-buffer them.
    single_buffer_consts = (no == 1)

    # ---- explicit VMEM budget (worst-case double-buffered) with headroom ----
    bpe = 4
    need = (2 * (tb * F_pad + tb * o_tile)            # x + out, double-buffered
            + 2 * (F_pad * o_tile + 2 * o_tile)) * bpe  # ct_m2 + c2 + nisg
    vmem_limit = int(min(max(2 * need, 16 << 20), 48 << 20))

    cost = pl.CostEstimate(
        flops=2 * B_pad * O_pad * F_pad,
        transcendentals=B_pad * O_pad,
        bytes_accessed=bpe * (B_pad * F_pad + F_pad * O_pad
                              + B_pad * O_pad + 2 * O_pad),
    )

    def build(single_buf):
        const_kw = dict(pipeline_mode=pl.Buffered(1)) if single_buf else {}
        return pl.pallas_call(
            rbf_kernel,
            out_shape=jax.ShapeDtypeStruct((B_pad, O_pad), out_dtype),
            grid_spec=pltpu.PrefetchScalarGridSpec(
                num_scalar_prefetch=0,
                grid=grid,
                in_specs=[
                    pl.BlockSpec((tb, F_pad), lambda i, j: (i, 0)),               # x tile
                    pl.BlockSpec((F_pad, o_tile), lambda i, j: (0, j), **const_kw),  # -2*C^T
                    pl.BlockSpec((1, o_tile), lambda i, j: (0, j), **const_kw),      # ||c||^2
                    pl.BlockSpec((1, o_tile), lambda i, j: (0, j), **const_kw),      # -1/sigma^2
                ],
                out_specs=pl.BlockSpec((tb, o_tile), lambda i, j: (i, j)),
            ),
            compiler_params=pltpu.CompilerParams(
                dimension_semantics=("parallel", "parallel"),
                vmem_limit_bytes=vmem_limit,
            ),
            cost_estimate=cost,
        )

    args = (xp, ct_m2, c2, nisg)
    if single_buffer_consts:
        try:
            out = build(True)(*args)
        except Exception:
            # Fallback if Buffered(1) is rejected by this JAX/Mosaic version.
            out = build(False)(*args)
    else:
        out = build(False)(*args)

    if B_pad == B and O_pad == O:
        return out                     # no extra HBM pass for slicing
    return out[:B, :O]


def rbf_reference(x, centers, log_sigmas):
    # Pure-JAX mirror of the PyTorch forward for verification (gaussian basis).
    diff = x[:, None, :] - centers[None, :, :]                  # (B, O, F)
    dist = jnp.sqrt(jnp.sum(diff * diff, axis=-1)) / jnp.exp(log_sigmas)[None, :]
    return jnp.exp(-(dist * dist))


if __name__ == "__main__":
    B, in_features, out_features = 16, 32, 16

    key = jax.random.PRNGKey(0)
    kx, kc = jax.random.split(key)

    x = jax.random.normal(kx, (B, in_features), dtype=jnp.float32)
    # reset_parameters(): centers ~ N(0, 1), log_sigmas = 0
    centers = jax.random.normal(kc, (out_features, in_features), dtype=jnp.float32)
    log_sigmas = jnp.zeros((out_features,), dtype=jnp.float32)

    out = rbf_forward(x, centers, log_sigmas)
    out = jax.block_until_ready(out)

    ref = rbf_reference(x, centers, log_sigmas)
    assert out.shape == (B, out_features)
    assert jnp.allclose(out, ref, rtol=1e-4, atol=1e-5), "mismatch vs reference"

    print("KERNEL_OK")
</pallas_src>

<mosaic_0001>
module attributes {stable_mosaic.version = 11 : i64} {
  func.func @rbf_kernel(%arg0: i32, %arg1: i32, %arg2: memref<16x128xf32, #tpu.memory_space<vmem>>, %arg3: memref<128x128xf32, #tpu.memory_space<vmem>>, %arg4: memref<1x128xf32, #tpu.memory_space<vmem>>, %arg5: memref<1x128xf32, #tpu.memory_space<vmem>>, %arg6: memref<16x128xf32, #tpu.memory_space<vmem>>) attributes {dimension_semantics = [#tpu.dimension_semantics<parallel>, #tpu.dimension_semantics<parallel>], iteration_bounds = array<i64: 1, 1>, scalar_prefetch = 0 : i64, scratch_operands = 0 : i64, tpu.core_type = #tpu.core_type<tc>, window_params = [{transform_indices = @transform_0, window_bounds = array<i64: 16, 128>}, {pipeline_mode = #tpu.pipeline_mode<synchronous>, transform_indices = @transform_1, window_bounds = array<i64: 128, 128>}, {pipeline_mode = #tpu.pipeline_mode<synchronous>, transform_indices = @transform_2, window_bounds = array<i64: 1, 128>}, {pipeline_mode = #tpu.pipeline_mode<synchronous>, transform_indices = @transform_3, window_bounds = array<i64: 1, 128>}, {transform_indices = @transform_4, window_bounds = array<i64: 16, 128>}]} {
    %c0 = arith.constant 0 : index
    %c0_0 = arith.constant 0 : index
    %0 = vector.load %arg2[%c0, %c0_0] : memref<16x128xf32, #tpu.memory_space<vmem>>, vector<16x128xf32>
    %1 = arith.mulf %0, %0 : vector<16x128xf32>
    %cst = arith.constant dense<0.000000e+00> : vector<16xf32>
    %2 = vector.multi_reduction <add>, %1, %cst [1] : vector<16x128xf32> to vector<16xf32>
    %3 = vector.shape_cast %2 : vector<16xf32> to vector<16x1xf32>
    %c0_1 = arith.constant 0 : index
    %c0_2 = arith.constant 0 : index
    %4 = vector.load %arg3[%c0_1, %c0_2] : memref<128x128xf32, #tpu.memory_space<vmem>>, vector<128x128xf32>
    %cst_3 = arith.constant dense<0.000000e+00> : vector<16x128xf32>
    %5 = tpu.matmul %0, %4, %cst_3 {dimension_numbers = #tpu.dot_dimension_numbers<[1], [0], [0], [1], [0, 0, 1, 1], [], []>} : vector<16x128xf32>, vector<128x128xf32>, vector<16x128xf32> -> vector<16x128xf32>
    %c0_4 = arith.constant 0 : index
    %c0_5 = arith.constant 0 : index
    %6 = vector.load %arg4[%c0_4, %c0_5] : memref<1x128xf32, #tpu.memory_space<vmem>>, vector<1x128xf32>
    %7 = vector.broadcast %3 : vector<16x1xf32> to vector<16x128xf32>
    %8 = vector.broadcast %6 : vector<1x128xf32> to vector<16x128xf32>
    %9 = arith.addf %7, %8 : vector<16x128xf32>
    %10 = arith.addf %9, %5 : vector<16x128xf32>
    %cst_6 = arith.constant 0.000000e+00 : f32
    %11 = vector.broadcast %cst_6 : f32 to vector<16x128xf32>
    %12 = arith.maximumf %10, %11 : vector<16x128xf32>
    %c0_7 = arith.constant 0 : index
    %c0_8 = arith.constant 0 : index
    %13 = vector.load %arg5[%c0_7, %c0_8] : memref<1x128xf32, #tpu.memory_space<vmem>>, vector<1x128xf32>
    %14 = vector.broadcast %13 : vector<1x128xf32> to vector<16x128xf32>
    %15 = arith.mulf %12, %14 : vector<16x128xf32>
    %16 = math.exp %15 : vector<16x128xf32>
    %c0_9 = arith.constant 0 : index
    %c0_10 = arith.constant 0 : index
    %17 = vector.load %arg6[%c0_9, %c0_10] : memref<16x128xf32, #tpu.memory_space<vmem>>, vector<16x128xf32>
    tpu.vector_store %arg6[%c0_9, %c0_10], %16 {strides = array<i32>} : memref<16x128xf32, #tpu.memory_space<vmem>>, vector<16x128xf32>,
    return
  }
  func.func @transform_0(%arg0: i32, %arg1: i32) -> (i32, i32) {
    %c0_i32 = arith.constant 0 : i32
    %c0_i32_0 = arith.constant 0 : i32
    return %arg0, %c0_i32 : i32, i32
  }
  func.func @transform_1(%arg0: i32, %arg1: i32) -> (i32, i32) {
    %c0_i32 = arith.constant 0 : i32
    %c0_i32_0 = arith.constant 0 : i32
    return %c0_i32, %arg1 : i32, i32
  }
  func.func @transform_2(%arg0: i32, %arg1: i32) -> (i32, i32) {
    %c0_i32 = arith.constant 0 : i32
    %c0_i32_0 = arith.constant 0 : i32
    return %c0_i32, %arg1 : i32, i32
  }
  func.func @transform_3(%arg0: i32, %arg1: i32) -> (i32, i32) {
    %c0_i32 = arith.constant 0 : i32
    %c0_i32_0 = arith.constant 0 : i32
    return %c0_i32, %arg1 : i32, i32
  }
  func.func @transform_4(%arg0: i32, %arg1: i32) -> (i32, i32) {
    %c0_i32 = arith.constant 0 : i32
    return %arg0, %arg1 : i32, i32
  }
}

module attributes {stable_mosaic.version = 11 : i64} {
  func.func @rbf_kernel(%arg0: i32, %arg1: i32, %arg2: memref<16x128xf32, #tpu.memory_space<vmem>>, %arg3: memref<128x128xf32, #tpu.memory_space<vmem>>, %arg4: memref<1x128xf32, #tpu.memory_space<vmem>>, %arg5: memref<1x128xf32, #tpu.memory_space<vmem>>, %arg6: memref<16x128xf32, #tpu.memory_space<vmem>>) attributes {dimension_semantics = [#tpu.dimension_semantics<parallel>, #tpu.dimension_semantics<parallel>], iteration_bounds = array<i64: 1, 1>, scalar_prefetch = 0 : i64, scratch_operands = 0 : i64, tpu.core_type = #tpu.core_type<tc>, window_params = [{transform_indices = @transform_0, window_bounds = array<i64: 16, 128>}, {transform_indices = @transform_1, window_bounds = array<i64: 128, 128>}, {transform_indices = @transform_2, window_bounds = array<i64: 1, 128>}, {transform_indices = @transform_3, window_bounds = array<i64: 1, 128>}, {transform_indices = @transform_4, window_bounds = array<i64: 16, 128>}]} {
    %c0 = arith.constant 0 : index
    %c0_0 = arith.constant 0 : index
    %0 = vector.load %arg2[%c0, %c0_0] : memref<16x128xf32, #tpu.memory_space<vmem>>, vector<16x128xf32>
    %1 = arith.mulf %0, %0 : vector<16x128xf32>
    %cst = arith.constant dense<0.000000e+00> : vector<16xf32>
    %2 = vector.multi_reduction <add>, %1, %cst [1] : vector<16x128xf32> to vector<16xf32>
    %3 = vector.shape_cast %2 : vector<16xf32> to vector<16x1xf32>
    %c0_1 = arith.constant 0 : index
    %c0_2 = arith.constant 0 : index
    %4 = vector.load %arg3[%c0_1, %c0_2] : memref<128x128xf32, #tpu.memory_space<vmem>>, vector<128x128xf32>
    %cst_3 = arith.constant dense<0.000000e+00> : vector<16x128xf32>
    %5 = tpu.matmul %0, %4, %cst_3 {dimension_numbers = #tpu.dot_dimension_numbers<[1], [0], [0], [1], [0, 0, 1, 1], [], []>} : vector<16x128xf32>, vector<128x128xf32>, vector<16x128xf32> -> vector<16x128xf32>
    %c0_4 = arith.constant 0 : index
    %c0_5 = arith.constant 0 : index
    %6 = vector.load %arg4[%c0_4, %c0_5] : memref<1x128xf32, #tpu.memory_space<vmem>>, vector<1x128xf32>
    %7 = vector.broadcast %3 : vector<16x1xf32> to vector<16x128xf32>
    %8 = vector.broadcast %6 : vector<1x128xf32> to vector<16x128xf32>
    %9 = arith.addf %7, %8 : vector<16x128xf32>
    %10 = arith.addf %9, %5 : vector<16x128xf32>
    %cst_6 = arith.constant 0.000000e+00 : f32
    %11 = vector.broadcast %cst_6 : f32 to vector<16x128xf32>
    %12 = arith.maximumf %10, %11 : vector<16x128xf32>
    %c0_7 = arith.constant 0 : index
    %c0_8 = arith.constant 0 : index
    %13 = vector.load %arg5[%c0_7, %c0_8] : memref<1x128xf32, #tpu.memory_space<vmem>>, vector<1x128xf32>
    %14 = vector.broadcast %13 : vector<1x128xf32> to vector<16x128xf32>
    %15 = arith.mulf %12, %14 : vector<16x128xf32>
    %16 = math.exp %15 : vector<16x128xf32>
    %c0_9 = arith.constant 0 : index
    %c0_10 = arith.constant 0 : index
    %17 = vector.load %arg6[%c0_9, %c0_10] : memref<16x128xf32, #tpu.memory_space<vmem>>, vector<16x128xf32>
    tpu.vector_store %arg6[%c0_9, %c0_10], %16 {strides = array<i32>} : memref<16x128xf32, #tpu.memory_space<vmem>>, vector<16x128xf32>,
    return
  }
  func.func @transform_0(%arg0: i32, %arg1: i32) -> (i32, i32) {
    %c0_i32 = arith.constant 0 : i32
    %c0_i32_0 = arith.constant 0 : i32
    return %arg0, %c0_i32 : i32, i32
  }
  func.func @transform_1(%arg0: i32, %arg1: i32) -> (i32, i32) {
    %c0_i32 = arith.constant 0 : i32
    %c0_i32_0 = arith.constant 0 : i32
    return %c0_i32, %arg1 : i32, i32
  }
  func.func @transform_2(%arg0: i32, %arg1: i32) -> (i32, i32) {
    %c0_i32 = arith.constant 0 : i32
    %c0_i32_0 = arith.constant 0 : i32
    return %c0_i32, %arg1 : i32, i32
  }
  func.func @transform_3(%arg0: i32, %arg1: i32) -> (i32, i32) {
    %c0_i32 = arith.constant 0 : i32
    %c0_i32_0 = arith.constant 0 : i32
    return %c0_i32, %arg1 : i32, i32
  }
  func.func @transform_4(%arg0: i32, %arg1: i32) -> (i32, i32) {
    %c0_i32 = arith.constant 0 : i32
    return %arg0, %arg1 : i32, i32
  }
}

</mosaic_0001>

<llo_original>
// kernel: tpu_custom_call.1
$region0: #{tpu_custom_call.1}
  #allocation0 [shape = 'u32[]', space=smem, size = 0x4, offset = 0x4, fixed_abs, tag = 'smem constant byte address 0x4 - core index']
  #allocation1 [shape = 'u32[144,128]{1,0:T(1,128)}', space=vmem, size = 0x12000, scoped, tag = 'internal scratch']
  %s0 = inlined_call_operand.hbm [shape: f32[16,128], index: 0, kind: input, shape index: {}]
  %s1 = inlined_call_operand.hbm [shape: f32[128,128], index: 1, kind: input, shape index: {}]
  %s2 = inlined_call_operand.vmem [shape: f32[1,128], index: 2, kind: input, shape index: {}]
  %s3 = inlined_call_operand.vmem [shape: f32[1,128], index: 3, kind: input, shape index: {}]
  %s4 = inlined_call_operand.hbm [shape: f32[16,128], index: 4, kind: output, shape index: {}]
  %s5 = sld [smem:[#allocation0]]
  $region34: #{tpu_custom_call.1} parent=0
    _
  %s7 = ssub.s32 1, %s5
  %s8 = scalar_select 0, %s7, %s5
  $region1: #{tpu_custom_call.1} parent=0
    #allocation2 [shape = 'u8[8192]{0}', space=vmem, size = 0x2000, scoped, tag = 'input window, operand 0, single buffered']
    #allocation3 [shape = 's32[1]{0}', space=sflag, size = 0x4, scoped, tag = 'scoped memory for tpu_custom_call.1']
    #allocation4 [shape = 's32[1]{0}', space=sflag, size = 0x4, scoped, tag = 'scoped memory for tpu_custom_call.1']
    #allocation5 [shape = 'u8[65536]{0}', space=vmem, size = 0x10000, scoped, tag = 'input window, operand 1, single buffered']
    #allocation6 [shape = 's32[1]{0}', space=sflag, size = 0x4, scoped, tag = 'scoped memory for tpu_custom_call.1']
    #allocation7 [shape = 'u8[8192]{0}', space=vmem, size = 0x2000, scoped, tag = 'output window, operand 0, single buffered']
    %9 = vsyncpa [#allocation3], 0
    %10 = vsyncpa [#allocation6], 0
    %11 = vsyncpa [#allocation4], 0
    // Predicated region
    $region2: #{tpu_custom_call.1} parent=1 // pred_check
      _
    $region3: #{tpu_custom_call.1} parent=1 // pred_check_branch
      %13 = sbr.rel (0) target = $region5
    $region4: #{tpu_custom_call.1} parent=1 // pred_region
      %s15 = ssub.s32 256, 256
      %16 = vsyncadd [#allocation3], %s15
      %s17 = sshll.u32 [#allocation2], 4
      %s18 = int_to_ptr.vmem [resolvable:$true] %s17
      %23 = dma.hbm_to_vmem [thread:$0]  %s0, 256, %s18, [#allocation3], 128, 128, 8
    $region5: #{tpu_custom_call.1} parent=1 // pred_fallthru
      _
    // Predicated region
    $region6: #{tpu_custom_call.1} parent=1 // pred_check
      _
    $region7: #{tpu_custom_call.1} parent=1 // pred_check_branch
      %25 = sbr.rel (0) target = $region9
    $region8: #{tpu_custom_call.1} parent=1 // pred_region
      %s27 = ssub.s32 2048, 2048
      %28 = vsyncadd [#allocation6], %s27
      %s29 = sshll.u32 [#allocation5], 4
      %s30 = int_to_ptr.vmem [resolvable:$true] %s29
      %35 = dma.hbm_to_vmem [thread:$0]  %s1, 2048, %s30, [#allocation6], 128, 128, 8
    $region9: #{tpu_custom_call.1} parent=1 // pred_fallthru
      _
    // Predicated region
    $region10: #{tpu_custom_call.1} parent=1 // pred_check
      _
    $region11: #{tpu_custom_call.1} parent=1 // pred_check_branch
      %37 = sbr.rel (0) target = $region13
    $region12: #{tpu_custom_call.1} parent=1 // pred_region
      _
    $region13: #{tpu_custom_call.1} parent=1 // pred_fallthru
      _
    // Predicated region
    $region14: #{tpu_custom_call.1} parent=1 // pred_check
      _
    $region15: #{tpu_custom_call.1} parent=1 // pred_check_branch
      %39 = sbr.rel (0) target = $region17
    $region16: #{tpu_custom_call.1} parent=1 // pred_region
      _
    $region17: #{tpu_custom_call.1} parent=1 // pred_fallthru
      _
    // Predicated region
    $region18: #{tpu_custom_call.1} parent=1 // pred_check
      _
    $region19: #{tpu_custom_call.1} parent=1 // pred_check_branch
      %41 = sbr.rel (0) target = $region21
    $region20: #{tpu_custom_call.1} parent=1 // pred_region
      %42 = dma.done [#allocation3], 256
    $region21: #{tpu_custom_call.1} parent=1 // pred_fallthru
      _
    // Predicated region
    $region22: #{tpu_custom_call.1} parent=1 // pred_check
      _
    $region23: #{tpu_custom_call.1} parent=1 // pred_check_branch
      %44 = sbr.rel (0) target = $region25
    $region24: #{tpu_custom_call.1} parent=1 // pred_region
      %45 = dma.done [#allocation6], 2048
    $region25: #{tpu_custom_call.1} parent=1 // pred_fallthru
      _
    %v46 = vld [vmem:[#allocation2] sm:$0xff]
    %v47 = vld [vmem:[#allocation2 + $0x8] sm:$0xff]
    %v48 = vmul.f32 %v46, %v46
    %v49 = vmul.f32 %v47, %v47
    %50 = vadd.xlane.f32.xlu0 %v48
    %v51 = vpop.xlane.xlu0 %50
    %52 = vadd.xlane.f32.xlu0 %v49
    %v53 = vpop.xlane.xlu0 %52
    %v54 = vld [vmem:[#allocation5] sm:$0xff]
    %v55 = vld [vmem:[#allocation5 + $0x8] sm:$0xff]
    %v56 = vld [vmem:[#allocation5 + $0x10] sm:$0xff]
    %v57 = vld [vmem:[#allocation5 + $0x18] sm:$0xff]
    %v58 = vld [vmem:[#allocation5 + $0x20] sm:$0xff]
    %v59 = vld [vmem:[#allocation5 + $0x28] sm:$0xff]
    %v60 = vld [vmem:[#allocation5 + $0x30] sm:$0xff]
    %v61 = vld [vmem:[#allocation5 + $0x38] sm:$0xff]
    %v62 = vld [vmem:[#allocation5 + $0x40] sm:$0xff]
    %v63 = vld [vmem:[#allocation5 + $0x48] sm:$0xff]
    %v64 = vld [vmem:[#allocation5 + $0x50] sm:$0xff]
    %v65 = vld [vmem:[#allocation5 + $0x58] sm:$0xff]
    %v66 = vld [vmem:[#allocation5 + $0x60] sm:$0xff]
    %v67 = vld [vmem:[#allocation5 + $0x68] sm:$0xff]
    %v68 = vld [vmem:[#allocation5 + $0x70] sm:$0xff]
    %v69 = vld [vmem:[#allocation5 + $0x78] sm:$0xff]
    %70 = vmatprep.subr.mxu0 0.0
    %71 = vmatpush1.msra.mxu0 %v54
    %72 = vmatprep.subr.mxu0 0.0
    %73 = vmatpush1.msra.mxu0 %v55
    %74 = vmatprep.subr.mxu0 0.0
    %75 = vmatpush1.msra.mxu0 %v56
    %76 = vmatprep.subr.mxu0 0.0
    %77 = vmatpush1.msra.mxu0 %v57
    %78 = vmatprep.subr.mxu0 0.0
    %79 = vmatpush1.msra.mxu0 %v58
    %80 = vmatprep.subr.mxu0 0.0
    %81 = vmatpush1.msra.mxu0 %v59
    %82 = vmatprep.subr.mxu0 0.0
    %83 = vmatpush1.msra.mxu0 %v60
    %84 = vmatprep.subr.mxu0 0.0
    %85 = vmatpush1.msra.mxu0 %v61
    %86 = vmatprep.subr.mxu0 0.0
    %87 = vmatpush1.msra.mxu0 %v62
    %88 = vmatprep.subr.mxu0 0.0
    %89 = vmatpush1.msra.mxu0 %v63
    %90 = vmatprep.subr.mxu0 0.0
    %91 = vmatpush1.msra.mxu0 %v64
    %92 = vmatprep.subr.mxu0 0.0
    %93 = vmatpush1.msra.mxu0 %v65
    %94 = vmatprep.subr.mxu0 0.0
    %95 = vmatpush1.msra.mxu0 %v66
    %96 = vmatprep.subr.mxu0 0.0
    %97 = vmatpush1.msra.mxu0 %v67
    %98 = vmatprep.subr.mxu0 0.0
    %99 = vmatpush1.msra.mxu0 %v68
    %100 = vmatprep.subr.mxu0 0.0
    %101 = vmatpush1.msra.mxu0 %v69
    %102 = vmatprep.subr.mxu0 0.0
    %103 = vmatpush1.msra.mxu0 0.0
    %104 = vmatprep.subr.mxu0 0.0
    %105 = vmatpush1.msra.mxu0 0.0
    %106 = vmatprep.subr.mxu0 0.0
    %107 = vmatpush1.msra.mxu0 0.0
    %108 = vmatprep.subr.mxu0 0.0
    %109 = vmatpush1.msra.mxu0 0.0
    %110 = vmatprep.subr.mxu0 0.0
    %111 = vmatpush1.msra.mxu0 0.0
    %112 = vmatprep.subr.mxu0 0.0
    %113 = vmatpush1.msra.mxu0 0.0
    %114 = vmatprep.subr.mxu0 0.0
    %115 = vmatpush1.msra.mxu0 0.0
    %116 = vmatprep.subr.mxu0 0.0
    %117 = vmatpush1.msra.mxu0 0.0
    %118 = vmatprep.subr.mxu0 0.0
    %119 = vmatpush1.msra.mxu0 0.0
    %120 = vmatprep.subr.mxu0 0.0
    %121 = vmatpush1.msra.mxu0 0.0
    %122 = vmatprep.subr.mxu0 0.0
    %123 = vmatpush1.msra.mxu0 0.0
    %124 = vmatprep.subr.mxu0 0.0
    %125 = vmatpush1.msra.mxu0 0.0
    %126 = vmatprep.subr.mxu0 0.0
    %127 = vmatpush1.msra.mxu0 0.0
    %128 = vmatprep.subr.mxu0 0.0
    %129 = vmatpush1.msra.mxu0 0.0
    %130 = vmatprep.subr.mxu0 0.0
    %131 = vmatpush1.msra.mxu0 0.0
    %132 = vmatprep.subr.mxu0 0.0
    %133 = vmatpush1.msra.mxu0 0.0
    %134 = vmatprep.mubr.f32.mxu0 0.0
    %135 = vmatmul.mubr.f32.gmra.mrb[0].mxu0 %v46
    %v136 = vpop.f32.mrb[0].mxu0
    %v137 = vadd.f32 0.0, %v136
    %v138 = vpop.f32.mrb[0].mxu0
    %139 = vmatprep.mubr.f32.mxu0 0.0
    %140 = vmatmul.mubr.f32.gmra.mrb[0].mxu0 %v47
    %v141 = vpop.f32.mrb[0].mxu0
    %v142 = vadd.f32 0.0, %v141
    %v143 = vpop.f32.mrb[0].mxu0
    %144 = vdwg.mxu0
    %v145 = vld [vmem:[%s2] sm:$0x1]
    %v147 = vlaneseq
    %v148 = vshrl.u32 %v147, 7
    %v149 = vsub.s32 0, %v148
    %v150 = vrot.slane %v145, %v149
    %v152 = vadd.f32 %v51, %v150
    %v153 = vadd.f32 %v53, %v150
    %v154 = vadd.f32 %v152, %v137
    %v155 = vadd.f32 %v153, %v142
    %v156 = vmax.f32 %v154, 0.0
    %v157 = vmax.f32 %v155, 0.0
    %v158 = vld [vmem:[%s3] sm:$0x1]
    %v160 = vlaneseq
    %v161 = vshrl.u32 %v160, 7
    %v162 = vsub.s32 0, %v161
    %v163 = vrot.slane %v158, %v162
    %v165 = vmul.f32 %v156, %v163
    %v166 = vmul.f32 %v157, %v163
    %v167 = vmul.f32 %v165, 1.442695
    %v168 = vpow.pop %v167
    %v169 = vmul.f32 %v166, 1.442695
    %v170 = vpow.pop %v169
    %171 = vst [vmem:[#allocation7] sm:$0xff] %v168
    %172 = vst [vmem:[#allocation7 + $0x8] sm:$0xff] %v170
    // Predicated region
    $region26: #{tpu_custom_call.1} parent=1 // pred_check
      _
    $region27: #{tpu_custom_call.1} parent=1 // pred_check_branch
      %174 = sbr.rel (0) target = $region29
    $region28: #{tpu_custom_call.1} parent=1 // pred_region
      %s176 = ssub.s32 256, 256
      %177 = vsyncadd [#allocation4], %s176
      %s178 = sshll.u32 [#allocation7], 4
      %s179 = int_to_ptr.vmem [resolvable:$true] %s178
      %184 = dma.vmem_to_hbm [thread:$0]  %s179, 256, %s4, [#allocation4], 128, 128, 8
    $region29: #{tpu_custom_call.1} parent=1 // pred_fallthru
      _
    // Predicated region
    $region30: #{tpu_custom_call.1} parent=1 // pred_check
      _
    $region31: #{tpu_custom_call.1} parent=1 // pred_check_branch
      %186 = sbr.rel (0) target = $region33
    $region32: #{tpu_custom_call.1} parent=1 // pred_region
      %187 = dma.done [#allocation4], 256
    $region33: #{tpu_custom_call.1} parent=1 // pred_fallthru
      _
    %188 = vsyncpa [#allocation3], 1
    %189 = vsyncpa [#allocation6], 1
    %190 = vsyncpa [#allocation4], 1

// kernel: tpu_custom_call.1
$region0: #{tpu_custom_call.1}
  #allocation0 [shape = 'u32[]', space=smem, size = 0x4, offset = 0x4, fixed_abs, tag = 'smem constant byte address 0x4 - core index']
  #allocation1 [shape = 'u32[144,128]{1,0:T(1,128)}', space=vmem, size = 0x12000, scoped, tag = 'internal scratch']
  %s0 = inlined_call_operand.hbm [shape: f32[16,128], index: 0, kind: input, shape index: {}]
  %s1 = inlined_call_operand.hbm [shape: f32[128,128], index: 1, kind: input, shape index: {}]
  %s2 = inlined_call_operand.vmem [shape: f32[1,128], index: 2, kind: input, shape index: {}]
  %s3 = inlined_call_operand.vmem [shape: f32[1,128], index: 3, kind: input, shape index: {}]
  %s4 = inlined_call_operand.hbm [shape: f32[16,128], index: 4, kind: output, shape index: {}]
  %s5 = sld [smem:[#allocation0]]
  $region34: #{tpu_custom_call.1} parent=0
    _
  %s7 = ssub.s32 1, %s5
  %s8 = scalar_select 0, %s7, %s5
  $region1: #{tpu_custom_call.1} parent=0
    #allocation2 [shape = 'u8[8192]{0}', space=vmem, size = 0x2000, scoped, tag = 'input window, operand 0, single buffered']
    #allocation3 [shape = 's32[1]{0}', space=sflag, size = 0x4, scoped, tag = 'scoped memory for tpu_custom_call.1']
    #allocation4 [shape = 's32[1]{0}', space=sflag, size = 0x4, scoped, tag = 'scoped memory for tpu_custom_call.1']
    #allocation5 [shape = 'u8[65536]{0}', space=vmem, size = 0x10000, scoped, tag = 'input window, operand 1, single buffered']
    #allocation6 [shape = 's32[1]{0}', space=sflag, size = 0x4, scoped, tag = 'scoped memory for tpu_custom_call.1']
    #allocation7 [shape = 'u8[8192]{0}', space=vmem, size = 0x2000, scoped, tag = 'output window, operand 0, single buffered']
    %9 = vsyncpa [#allocation3], 0
    %10 = vsyncpa [#allocation6], 0
    %11 = vsyncpa [#allocation4], 0
    // Predicated region
    $region2: #{tpu_custom_call.1} parent=1 // pred_check
      _
    $region3: #{tpu_custom_call.1} parent=1 // pred_check_branch
      %13 = sbr.rel (0) target = $region5
    $region4: #{tpu_custom_call.1} parent=1 // pred_region
      %s15 = ssub.s32 256, 256
      %16 = vsyncadd [#allocation3], %s15
      %s17 = sshll.u32 [#allocation2], 4
      %s18 = int_to_ptr.vmem [resolvable:$true] %s17
      %23 = dma.hbm_to_vmem [thread:$0]  %s0, 256, %s18, [#allocation3], 128, 128, 8
    $region5: #{tpu_custom_call.1} parent=1 // pred_fallthru
      _
    // Predicated region
    $region6: #{tpu_custom_call.1} parent=1 // pred_check
      _
    $region7: #{tpu_custom_call.1} parent=1 // pred_check_branch
      %25 = sbr.rel (0) target = $region9
    $region8: #{tpu_custom_call.1} parent=1 // pred_region
      %s27 = ssub.s32 2048, 2048
      %28 = vsyncadd [#allocation6], %s27
      %s29 = sshll.u32 [#allocation5], 4
      %s30 = int_to_ptr.vmem [resolvable:$true] %s29
      %35 = dma.hbm_to_vmem [thread:$0]  %s1, 2048, %s30, [#allocation6], 128, 128, 8
    $region9: #{tpu_custom_call.1} parent=1 // pred_fallthru
      _
    // Predicated region
    $region10: #{tpu_custom_call.1} parent=1 // pred_check
      _
    $region11: #{tpu_custom_call.1} parent=1 // pred_check_branch
      %37 = sbr.rel (0) target = $region13
    $region12: #{tpu_custom_call.1} parent=1 // pred_region
      _
    $region13: #{tpu_custom_call.1} parent=1 // pred_fallthru
      _
    // Predicated region
    $region14: #{tpu_custom_call.1} parent=1 // pred_check
      _
    $region15: #{tpu_custom_call.1} parent=1 // pred_check_branch
      %39 = sbr.rel (0) target = $region17
    $region16: #{tpu_custom_call.1} parent=1 // pred_region
      _
    $region17: #{tpu_custom_call.1} parent=1 // pred_fallthru
      _
    // Predicated region
    $region18: #{tpu_custom_call.1} parent=1 // pred_check
      _
    $region19: #{tpu_custom_call.1} parent=1 // pred_check_branch
      %41 = sbr.rel (0) target = $region21
    $region20: #{tpu_custom_call.1} parent=1 // pred_region
      %42 = dma.done [#allocation3], 256
    $region21: #{tpu_custom_call.1} parent=1 // pred_fallthru
      _
    // Predicated region
    $region22: #{tpu_custom_call.1} parent=1 // pred_check
      _
    $region23: #{tpu_custom_call.1} parent=1 // pred_check_branch
      %44 = sbr.rel (0) target = $region25
    $region24: #{tpu_custom_call.1} parent=1 // pred_region
      %45 = dma.done [#allocation6], 2048
    $region25: #{tpu_custom_call.1} parent=1 // pred_fallthru
      _
    %v46 = vld [vmem:[#allocation2] sm:$0xff]
    %v47 = vld [vmem:[#allocation2 + $0x8] sm:$0xff]
    %v48 = vmul.f32 %v46, %v46
    %v49 = vmul.f32 %v47, %v47
    %50 = vadd.xlane.f32.xlu0 %v48
    %v51 = vpop.xlane.xlu0 %50
    %52 = vadd.xlane.f32.xlu0 %v49
    %v53 = vpop.xlane.xlu0 %52
    %v54 = vld [vmem:[#allocation5] sm:$0xff]
    %v55 = vld [vmem:[#allocation5 + $0x8] sm:$0xff]
    %v56 = vld [vmem:[#allocation5 + $0x10] sm:$0xff]
    %v57 = vld [vmem:[#allocation5 + $0x18] sm:$0xff]
    %v58 = vld [vmem:[#allocation5 + $0x20] sm:$0xff]
    %v59 = vld [vmem:[#allocation5 + $0x28] sm:$0xff]
    %v60 = vld [vmem:[#allocation5 + $0x30] sm:$0xff]
    %v61 = vld [vmem:[#allocation5 + $0x38] sm:$0xff]
    %v62 = vld [vmem:[#allocation5 + $0x40] sm:$0xff]
    %v63 = vld [vmem:[#allocation5 + $0x48] sm:$0xff]
    %v64 = vld [vmem:[#allocation5 + $0x50] sm:$0xff]
    %v65 = vld [vmem:[#allocation5 + $0x58] sm:$0xff]
    %v66 = vld [vmem:[#allocation5 + $0x60] sm:$0xff]
    %v67 = vld [vmem:[#allocation5 + $0x68] sm:$0xff]
    %v68 = vld [vmem:[#allocation5 + $0x70] sm:$0xff]
    %v69 = vld [vmem:[#allocation5 + $0x78] sm:$0xff]
    %70 = vmatprep.subr.mxu0 0.0
    %71 = vmatpush1.msra.mxu0 %v54
    %72 = vmatprep.subr.mxu0 0.0
    %73 = vmatpush1.msra.mxu0 %v55
    %74 = vmatprep.subr.mxu0 0.0
    %75 = vmatpush1.msra.mxu0 %v56
    %76 = vmatprep.subr.mxu0 0.0
    %77 = vmatpush1.msra.mxu0 %v57
    %78 = vmatprep.subr.mxu0 0.0
    %79 = vmatpush1.msra.mxu0 %v58
    %80 = vmatprep.subr.mxu0 0.0
    %81 = vmatpush1.msra.mxu0 %v59
    %82 = vmatprep.subr.mxu0 0.0
    %83 = vmatpush1.msra.mxu0 %v60
    %84 = vmatprep.subr.mxu0 0.0
    %85 = vmatpush1.msra.mxu0 %v61
    %86 = vmatprep.subr.mxu0 0.0
    %87 = vmatpush1.msra.mxu0 %v62
    %88 = vmatprep.subr.mxu0 0.0
    %89 = vmatpush1.msra.mxu0 %v63
    %90 = vmatprep.subr.mxu0 0.0
    %91 = vmatpush1.msra.mxu0 %v64
    %92 = vmatprep.subr.mxu0 0.0
    %93 = vmatpush1.msra.mxu0 %v65
    %94 = vmatprep.subr.mxu0 0.0
    %95 = vmatpush1.msra.mxu0 %v66
    %96 = vmatprep.subr.mxu0 0.0
    %97 = vmatpush1.msra.mxu0 %v67
    %98 = vmatprep.subr.mxu0 0.0
    %99 = vmatpush1.msra.mxu0 %v68
    %100 = vmatprep.subr.mxu0 0.0
    %101 = vmatpush1.msra.mxu0 %v69
    %102 = vmatprep.subr.mxu0 0.0
    %103 = vmatpush1.msra.mxu0 0.0
    %104 = vmatprep.subr.mxu0 0.0
    %105 = vmatpush1.msra.mxu0 0.0
    %106 = vmatprep.subr.mxu0 0.0
    %107 = vmatpush1.msra.mxu0 0.0
    %108 = vmatprep.subr.mxu0 0.0
    %109 = vmatpush1.msra.mxu0 0.0
    %110 = vmatprep.subr.mxu0 0.0
    %111 = vmatpush1.msra.mxu0 0.0
    %112 = vmatprep.subr.mxu0 0.0
    %113 = vmatpush1.msra.mxu0 0.0
    %114 = vmatprep.subr.mxu0 0.0
    %115 = vmatpush1.msra.mxu0 0.0
    %116 = vmatprep.subr.mxu0 0.0
    %117 = vmatpush1.msra.mxu0 0.0
    %118 = vmatprep.subr.mxu0 0.0
    %119 = vmatpush1.msra.mxu0 0.0
    %120 = vmatprep.subr.mxu0 0.0
    %121 = vmatpush1.msra.mxu0 0.0
    %122 = vmatprep.subr.mxu0 0.0
    %123 = vmatpush1.msra.mxu0 0.0
    %124 = vmatprep.subr.mxu0 0.0
    %125 = vmatpush1.msra.mxu0 0.0
    %126 = vmatprep.subr.mxu0 0.0
    %127 = vmatpush1.msra.mxu0 0.0
    %128 = vmatprep.subr.mxu0 0.0
    %129 = vmatpush1.msra.mxu0 0.0
    %130 = vmatprep.subr.mxu0 0.0
    %131 = vmatpush1.msra.mxu0 0.0
    %132 = vmatprep.subr.mxu0 0.0
    %133 = vmatpush1.msra.mxu0 0.0
    %134 = vmatprep.mubr.f32.mxu0 0.0
    %135 = vmatmul.mubr.f32.gmra.mrb[0].mxu0 %v46
    %v136 = vpop.f32.mrb[0].mxu0
    %v137 = vadd.f32 0.0, %v136
    %v138 = vpop.f32.mrb[0].mxu0
    %139 = vmatprep.mubr.f32.mxu0 0.0
    %140 = vmatmul.mubr.f32.gmra.mrb[0].mxu0 %v47
    %v141 = vpop.f32.mrb[0].mxu0
    %v142 = vadd.f32 0.0, %v141
    %v143 = vpop.f32.mrb[0].mxu0
    %144 = vdwg.mxu0
    %v145 = vld [vmem:[%s2] sm:$0x1]
    %v147 = vlaneseq
    %v148 = vshrl.u32 %v147, 7
    %v149 = vsub.s32 0, %v148
    %v150 = vrot.slane %v145, %v149
    %v152 = vadd.f32 %v51, %v150
    %v153 = vadd.f32 %v53, %v150
    %v154 = vadd.f32 %v152, %v137
    %v155 = vadd.f32 %v153, %v142
    %v156 = vmax.f32 %v154, 0.0
    %v157 = vmax.f32 %v155, 0.0
    %v158 = vld [vmem:[%s3] sm:$0x1]
    %v160 = vlaneseq
    %v161 = vshrl.u32 %v160, 7
    %v162 = vsub.s32 0, %v161
    %v163 = vrot.slane %v158, %v162
    %v165 = vmul.f32 %v156, %v163
    %v166 = vmul.f32 %v157, %v163
    %v167 = vmul.f32 %v165, 1.442695
    %v168 = vpow.pop %v167
    %v169 = vmul.f32 %v166, 1.442695
    %v170 = vpow.pop %v169
    %171 = vst [vmem:[#allocation7] sm:$0xff] %v168
    %172 = vst [vmem:[#allocation7 + $0x8] sm:$0xff] %v170
    // Predicated region
    $region26: #{tpu_custom_call.1} parent=1 // pred_check
      _
    $region27: #{tpu_custom_call.1} parent=1 // pred_check_branch
      %174 = sbr.rel (0) target = $region29
    $region28: #{tpu_custom_call.1} parent=1 // pred_region
      %s176 = ssub.s32 256, 256
      %177 = vsyncadd [#allocation4], %s176
      %s178 = sshll.u32 [#allocation7], 4
      %s179 = int_to_ptr.vmem [resolvable:$true] %s178
      %184 = dma.vmem_to_hbm [thread:$0]  %s179, 256, %s4, [#allocation4], 128, 128, 8
    $region29: #{tpu_custom_call.1} parent=1 // pred_fallthru
      _
    // Predicated region
    $region30: #{tpu_custom_call.1} parent=1 // pred_check
      _
    $region31: #{tpu_custom_call.1} parent=1 // pred_check_branch
      %186 = sbr.rel (0) target = $region33
    $region32: #{tpu_custom_call.1} parent=1 // pred_region
      %187 = dma.done [#allocation4], 256
    $region33: #{tpu_custom_call.1} parent=1 // pred_fallthru
      _
    %188 = vsyncpa [#allocation3], 1
    %189 = vsyncpa [#allocation6], 1
    %190 = vsyncpa [#allocation4], 1

</llo_original>
